<compile_context>
chip_gen: v7x
topology: tpu7x:2x2x1
jax: 0.10.0
libtpu: 0.0.40
codegen_flags: <defaults>
</compile_context>

<pallas_src>
import functools
import math

import jax
import jax.numpy as jnp
import numpy as np
from jax.experimental import pallas as pl
from jax.experimental.pallas import tpu as pltpu


# ---------------------------------------------------------------------------
# kernel: one batch element per grid step, all heads fused
# ---------------------------------------------------------------------------
def mha_kernel(x_ref, wqkv_ref, bqkv_ref, wo_ref, bo_ref,
               cos_ref, sin_ref, mask_ref, o_ref, attn_scr,
               *, num_heads, d_k, scale):
    x = x_ref[0]                                   # (N, C) bf16
    C = num_heads * d_k
    half = d_k // 2

    # fused QKV projection: one MXU push, K = C, lane width 3C, f32 accumulate
    qkv = jnp.dot(x, wqkv_ref[...],
                  preferred_element_type=jnp.float32) + bqkv_ref[...]  # (N,3C)

    cos = cos_ref[...]                             # (N, d_k)  [cos, cos]
    sin = sin_ref[...]                             # (N, d_k)  [-sin, sin]
    neg = mask_ref[...]                            # (N, N) additive causal mask

    def rope(t):                                   # t: (N, d_k) f32
        # half-swap + sign-folded sin table: 1 swap, 2 mul, 1 add per tensor.
        # TODO(synk): at production d_k (full 128-lane tiles) use
        # pltpu.roll(t, shift=half, axis=-1) so the swap lands on the XLU.
        swapped = jnp.concatenate([t[:, half:], t[:, :half]], axis=-1)
        return t * cos + swapped * sin

    for h in range(num_heads):                     # static unroll over heads
        lo = h * d_k
        q_h = rope(qkv[:, lo:lo + d_k]) * scale    # fold 1/sqrt(d_k) into q
        k_h = rope(qkv[:, C + lo:C + lo + d_k])
        v_h = qkv[:, 2 * C + lo:2 * C + lo + d_k]

        # causal scores, bf16 operands on the MXU, f32 accumulate
        s = jnp.einsum('nd,md->nm',
                       q_h.astype(jnp.bfloat16), k_h.astype(jnp.bfloat16),
                       preferred_element_type=jnp.float32) + neg

        # explicit softmax with deferred normalization
        m = jnp.max(s, axis=-1, keepdims=True)
        e = jnp.exp(s - m)
        denom = jnp.sum(e, axis=-1, keepdims=True)

        attn_h = jnp.dot(e.astype(jnp.bfloat16), v_h.astype(jnp.bfloat16),
                         preferred_element_type=jnp.float32)    # (N, d_k)
        # normalize the (N, d_k) result, not the (N, N) probabilities
        attn_scr[:, lo:lo + d_k] = attn_h * pl.reciprocal(denom, approx=True)

    # single lane-dense output projection over all heads (K = C)
    o_ref[0] = jnp.dot(attn_scr[...].astype(jnp.bfloat16), wo_ref[...],
                       preferred_element_type=jnp.float32) + bo_ref[...]


# ---------------------------------------------------------------------------
# wrapper: one-time layout prep + jitted forward
# ---------------------------------------------------------------------------
def make_mha(wqkv, bqkv, wo, bo, *, num_heads, seq_len):
    C = wo.shape[0]
    assert C % num_heads == 0
    d_k = C // num_heads
    half = d_k // 2
    scale = 1.0 / math.sqrt(d_k)
    N = seq_len

    # ---- one-time layout plumbing (hoisted out of the per-call path) ----
    wqkv_bf = wqkv.astype(jnp.bfloat16)                      # (C, 3C)
    bqkv2 = bqkv.reshape(1, 3 * C).astype(jnp.float32)
    wo_bf = wo.astype(jnp.bfloat16)                          # (C, C)
    bo2 = bo.reshape(1, C).astype(jnp.float32)

    # RoPE tables (bf16 theta / positions mirror the PyTorch reference)
    theta = 1.0 / 10000 ** (jnp.arange(0, half, dtype=jnp.bfloat16) / half)
    freqs = jnp.outer(jnp.arange(N, dtype=jnp.bfloat16), theta)   # (N, half)
    sin = jnp.sin(freqs).astype(jnp.float32)
    cos = jnp.cos(freqs).astype(jnp.float32)
    cos2 = jnp.concatenate([cos, cos], axis=-1)              # (N, d_k)
    sinf = jnp.concatenate([-sin, sin], axis=-1)             # (N, d_k) folded

    # additive causal mask, built once (diagonal always unmasked)
    row = jax.lax.broadcasted_iota(jnp.int32, (N, N), 0)
    col = jax.lax.broadcasted_iota(jnp.int32, (N, N), 1)
    neg_mask = jnp.where(col <= row, 0.0, -1e30).astype(jnp.float32)

    kernel = functools.partial(mha_kernel, num_heads=num_heads, d_k=d_k,
                               scale=scale)

    def const_spec(shape):                                   # grid-invariant
        nd = len(shape)
        return pl.BlockSpec(shape, lambda b, _nd=nd: (0,) * _nd)

    @jax.jit
    def fwd(x):
        B = x.shape[0]
        return pl.pallas_call(
            kernel,
            out_shape=jax.ShapeDtypeStruct((B, N, C), jnp.float32),
            grid=(B,),
            in_specs=[
                pl.BlockSpec((1, N, C), lambda b: (b, 0, 0)),   # x
                const_spec((C, 3 * C)),                         # W_qkv
                const_spec((1, 3 * C)),                         # b_qkv
                const_spec((C, C)),                             # W_o
                const_spec((1, C)),                             # b_o
                const_spec((N, d_k)),                           # cos (tiled)
                const_spec((N, d_k)),                           # sin (folded)
                const_spec((N, N)),                             # causal mask
            ],
            out_specs=pl.BlockSpec((1, N, C), lambda b: (b, 0, 0)),
            scratch_shapes=[pltpu.VMEM((N, C), jnp.float32)],
            compiler_params=pltpu.CompilerParams(
                dimension_semantics=("parallel",),
                # Toy tiles use a tiny fraction of VMEM.  Raise toward
                # 64-100 MiB on v6e/v5e (128 MiB physical) and cap ~48 MiB on
                # v7x (64 MiB physical) once flash-style production tiles land.
                vmem_limit_bytes=32 * 1024 * 1024),
        )(x.astype(jnp.bfloat16), wqkv_bf, bqkv2, wo_bf, bo2,
          cos2, sinf, neg_mask)

    return fwd


# ---------------------------------------------------------------------------
# pure-JAX f32 reference (original module semantics, dropout = identity)
# ---------------------------------------------------------------------------
def reference_f32(x, wqkv, bqkv, wo, bo, *, num_heads):
    B, N, C = x.shape
    d_k = C // num_heads
    half = d_k // 2
    scale = 1.0 / math.sqrt(d_k)

    qkv = jnp.einsum('bnc,cd->bnd', x, wqkv) + bqkv
    q, k, v = qkv[..., :C], qkv[..., C:2 * C], qkv[..., 2 * C:]

    def split(t):
        return t.reshape(B, N, num_heads, d_k).transpose(0, 2, 1, 3)

    q, k, v = split(q), split(k), split(v)

    theta = 1.0 / 10000 ** (jnp.arange(0, half, dtype=jnp.bfloat16) / half)
    freqs = jnp.outer(jnp.arange(N, dtype=jnp.bfloat16), theta)
    sin = jnp.sin(freqs).astype(jnp.float32)[None, None]
    cos = jnp.cos(freqs).astype(jnp.float32)[None, None]

    def rope(t):
        t1, t2 = t[..., :half], t[..., half:]
        return jnp.concatenate([t1 * cos - t2 * sin, t1 * sin + t2 * cos], -1)

    q, k = rope(q), rope(k)
    s = jnp.einsum('bhqd,bhkd->bhqk', q, k) * scale
    mask = jnp.tril(jnp.ones((N, N), dtype=bool))
    s = jnp.where(mask, s, -jnp.inf)
    p = jax.nn.softmax(s, axis=-1)
    o = jnp.einsum('bhqk,bhkd->bhqd', p, v)
    o = o.transpose(0, 2, 1, 3).reshape(B, N, C)
    return jnp.einsum('bnc,cd->bnd', o, wo) + bo


# ---------------------------------------------------------------------------
if __name__ == "__main__":
    B, N, C, H = 2, 8, 32, 4   # batch, seq, embed_dim, num_heads

    key = jax.random.PRNGKey(0)
    ks = jax.random.split(key, 6)

    def init(k, shape, s=0.05):
        return s * jax.random.normal(k, shape, dtype=jnp.float32)

    wqkv = init(ks[0], (C, 3 * C))   # layer_1 weight, (in, out) layout
    bqkv = init(ks[1], (3 * C,))
    wo = init(ks[2], (C, C))
    bo = init(ks[3], (C,))
    x = jax.random.normal(ks[4], (B, N, C), dtype=jnp.float32)

    fwd = make_mha(wqkv, bqkv, wo, bo, num_heads=H, seq_len=N)
    out = jax.block_until_ready(fwd(x))

    ref = reference_f32(x, wqkv, bqkv, wo, bo, num_heads=H)
    np.testing.assert_allclose(np.asarray(out), np.asarray(ref),
                               rtol=2e-2, atol=2e-2)
    print("KERNEL_OK")
</pallas_src>

<mosaic_0001>
module attributes {stable_mosaic.version = 11 : i64} {
  func.func @mha_kernel(%arg0: i32, %arg1: memref<1x8x32xbf16, #tpu.memory_space<vmem>>, %arg2: memref<32x96xbf16, #tpu.memory_space<vmem>>, %arg3: memref<1x96xf32, #tpu.memory_space<vmem>>, %arg4: memref<32x32xbf16, #tpu.memory_space<vmem>>, %arg5: memref<1x32xf32, #tpu.memory_space<vmem>>, %arg6: memref<8x8xf32, #tpu.memory_space<vmem>>, %arg7: memref<8x8xf32, #tpu.memory_space<vmem>>, %arg8: memref<8x8xf32, #tpu.memory_space<vmem>>, %arg9: memref<1x8x32xf32, #tpu.memory_space<vmem>>, %arg10: memref<8x32xf32, #tpu.memory_space<vmem>>) attributes {dimension_semantics = [#tpu.dimension_semantics<parallel>], iteration_bounds = array<i64: 2>, scalar_prefetch = 0 : i64, scratch_operands = 1 : i64, tpu.core_type = #tpu.core_type<tc>, window_params = [{transform_indices = @transform_0, window_bounds = array<i64: 1, 8, 32>}, {pipeline_mode = #tpu.pipeline_mode<synchronous>, transform_indices = @transform_1, window_bounds = array<i64: 32, 96>}, {pipeline_mode = #tpu.pipeline_mode<synchronous>, transform_indices = @transform_2, window_bounds = array<i64: 1, 96>}, {pipeline_mode = #tpu.pipeline_mode<synchronous>, transform_indices = @transform_3, window_bounds = array<i64: 32, 32>}, {pipeline_mode = #tpu.pipeline_mode<synchronous>, transform_indices = @transform_4, window_bounds = array<i64: 1, 32>}, {pipeline_mode = #tpu.pipeline_mode<synchronous>, transform_indices = @transform_5, window_bounds = array<i64: 8, 8>}, {pipeline_mode = #tpu.pipeline_mode<synchronous>, transform_indices = @transform_6, window_bounds = array<i64: 8, 8>}, {pipeline_mode = #tpu.pipeline_mode<synchronous>, transform_indices = @transform_7, window_bounds = array<i64: 8, 8>}, {transform_indices = @transform_8, window_bounds = array<i64: 1, 8, 32>}]} {
    %c0 = arith.constant 0 : index
    %c0_0 = arith.constant 0 : index
    %c0_1 = arith.constant 0 : index
    %0 = vector.load %arg1[%c0, %c0_0, %c0_1] : memref<1x8x32xbf16, #tpu.memory_space<vmem>>, vector<1x8x32xbf16>
    %1 = vector.shape_cast %0 : vector<1x8x32xbf16> to vector<8x32xbf16>
    %c0_2 = arith.constant 0 : index
    %c0_3 = arith.constant 0 : index
    %2 = vector.load %arg2[%c0_2, %c0_3] : memref<32x96xbf16, #tpu.memory_space<vmem>>, vector<32x96xbf16>
    %cst = arith.constant dense<0.000000e+00> : vector<8x96xf32>
    %3 = tpu.matmul %1, %2, %cst {dimension_numbers = #tpu.dot_dimension_numbers<[1], [0], [0], [1], [0, 0, 1, 1], [], []>} : vector<8x32xbf16>, vector<32x96xbf16>, vector<8x96xf32> -> vector<8x96xf32>
    %c0_4 = arith.constant 0 : index
    %c0_5 = arith.constant 0 : index
    %4 = vector.load %arg3[%c0_4, %c0_5] : memref<1x96xf32, #tpu.memory_space<vmem>>, vector<1x96xf32>
    %5 = vector.broadcast %4 : vector<1x96xf32> to vector<8x96xf32>
    %6 = arith.addf %3, %5 : vector<8x96xf32>
    %c0_6 = arith.constant 0 : index
    %c0_7 = arith.constant 0 : index
    %7 = vector.load %arg6[%c0_6, %c0_7] : memref<8x8xf32, #tpu.memory_space<vmem>>, vector<8x8xf32>
    %c0_8 = arith.constant 0 : index
    %c0_9 = arith.constant 0 : index
    %8 = vector.load %arg7[%c0_8, %c0_9] : memref<8x8xf32, #tpu.memory_space<vmem>>, vector<8x8xf32>
    %c0_10 = arith.constant 0 : index
    %c0_11 = arith.constant 0 : index
    %9 = vector.load %arg8[%c0_10, %c0_11] : memref<8x8xf32, #tpu.memory_space<vmem>>, vector<8x8xf32>
    %10 = vector.extract_strided_slice %6 {offsets = [0, 0], sizes = [8, 8], strides = [1, 1]} : vector<8x96xf32> to vector<8x8xf32>
    %11 = vector.extract_strided_slice %10 {offsets = [0, 4], sizes = [8, 4], strides = [1, 1]} : vector<8x8xf32> to vector<8x4xf32>
    %12 = vector.extract_strided_slice %10 {offsets = [0, 0], sizes = [8, 4], strides = [1, 1]} : vector<8x8xf32> to vector<8x4xf32>
    %13 = tpu.concatenate %11, %12 in 1 : vector<8x4xf32>, vector<8x4xf32> -> vector<8x8xf32>
    %14 = arith.mulf %10, %7 : vector<8x8xf32>
    %15 = arith.mulf %13, %8 : vector<8x8xf32>
    %16 = arith.addf %14, %15 : vector<8x8xf32>
    %cst_12 = arith.constant 0.353553385 : f32
    %17 = vector.broadcast %cst_12 : f32 to vector<8x8xf32>
    %18 = arith.mulf %16, %17 : vector<8x8xf32>
    %19 = vector.extract_strided_slice %6 {offsets = [0, 32], sizes = [8, 8], strides = [1, 1]} : vector<8x96xf32> to vector<8x8xf32>
    %20 = vector.extract_strided_slice %19 {offsets = [0, 4], sizes = [8, 4], strides = [1, 1]} : vector<8x8xf32> to vector<8x4xf32>
    %21 = vector.extract_strided_slice %19 {offsets = [0, 0], sizes = [8, 4], strides = [1, 1]} : vector<8x8xf32> to vector<8x4xf32>
    %22 = tpu.concatenate %20, %21 in 1 : vector<8x4xf32>, vector<8x4xf32> -> vector<8x8xf32>
    %23 = arith.mulf %19, %7 : vector<8x8xf32>
    %24 = arith.mulf %22, %8 : vector<8x8xf32>
    %25 = arith.addf %23, %24 : vector<8x8xf32>
    %26 = vector.extract_strided_slice %6 {offsets = [0, 64], sizes = [8, 8], strides = [1, 1]} : vector<8x96xf32> to vector<8x8xf32>
    %27 = arith.truncf %18 : vector<8x8xf32> to vector<8x8xbf16>
    %28 = arith.truncf %25 : vector<8x8xf32> to vector<8x8xbf16>
    "tpu.trace_start"() <{level = 10 : i32, message = "nd,md->nm"}> : () -> ()
    %cst_13 = arith.constant dense<0.000000e+00> : vector<8x8xf32>
    %29 = tpu.matmul %27, %28, %cst_13 {dimension_numbers = #tpu.dot_dimension_numbers<[1], [1], [0], [0], [0, 0, 1, 0], [], []>} : vector<8x8xbf16>, vector<8x8xbf16>, vector<8x8xf32> -> vector<8x8xf32>
    "tpu.trace_stop"() : () -> ()
    %30 = arith.addf %29, %9 : vector<8x8xf32>
    %cst_14 = arith.constant dense<0xFF800000> : vector<8xf32>
    %31 = vector.multi_reduction <maximumf>, %30, %cst_14 [1] : vector<8x8xf32> to vector<8xf32>
    %32 = vector.shape_cast %31 : vector<8xf32> to vector<8x1xf32>
    %33 = vector.broadcast %32 : vector<8x1xf32> to vector<8x8xf32>
    %34 = arith.subf %30, %33 : vector<8x8xf32>
    %35 = math.exp %34 : vector<8x8xf32>
    %cst_15 = arith.constant dense<0.000000e+00> : vector<8xf32>
    %36 = vector.multi_reduction <add>, %35, %cst_15 [1] : vector<8x8xf32> to vector<8xf32>
    %37 = vector.shape_cast %36 : vector<8xf32> to vector<8x1xf32>
    %38 = arith.truncf %35 : vector<8x8xf32> to vector<8x8xbf16>
    %39 = arith.truncf %26 : vector<8x8xf32> to vector<8x8xbf16>
    %cst_16 = arith.constant dense<0.000000e+00> : vector<8x8xf32>
    %40 = tpu.matmul %38, %39, %cst_16 {dimension_numbers = #tpu.dot_dimension_numbers<[1], [0], [0], [1], [0, 0, 1, 1], [], []>} : vector<8x8xbf16>, vector<8x8xbf16>, vector<8x8xf32> -> vector<8x8xf32>
    %41 = tpu.reciprocal %37 {approx = true} : vector<8x1xf32> -> vector<8x1xf32>
    %42 = vector.broadcast %41 : vector<8x1xf32> to vector<8x8xf32>
    %43 = arith.mulf %40, %42 : vector<8x8xf32>
    %c0_17 = arith.constant 0 : index
    %c0_18 = arith.constant 0 : index
    %44 = vector.load %arg10[%c0_17, %c0_18] : memref<8x32xf32, #tpu.memory_space<vmem>>, vector<8x8xf32>
    tpu.vector_store %arg10[%c0_17, %c0_18], %43 {strides = array<i32>} : memref<8x32xf32, #tpu.memory_space<vmem>>, vector<8x8xf32>,
    %45 = vector.extract_strided_slice %6 {offsets = [0, 8], sizes = [8, 8], strides = [1, 1]} : vector<8x96xf32> to vector<8x8xf32>
    %46 = vector.extract_strided_slice %45 {offsets = [0, 4], sizes = [8, 4], strides = [1, 1]} : vector<8x8xf32> to vector<8x4xf32>
    %47 = vector.extract_strided_slice %45 {offsets = [0, 0], sizes = [8, 4], strides = [1, 1]} : vector<8x8xf32> to vector<8x4xf32>
    %48 = tpu.concatenate %46, %47 in 1 : vector<8x4xf32>, vector<8x4xf32> -> vector<8x8xf32>
    %49 = arith.mulf %45, %7 : vector<8x8xf32>
    %50 = arith.mulf %48, %8 : vector<8x8xf32>
    %51 = arith.addf %49, %50 : vector<8x8xf32>
    %cst_19 = arith.constant 0.353553385 : f32
    %52 = vector.broadcast %cst_19 : f32 to vector<8x8xf32>
    %53 = arith.mulf %51, %52 : vector<8x8xf32>
    %54 = vector.extract_strided_slice %6 {offsets = [0, 40], sizes = [8, 8], strides = [1, 1]} : vector<8x96xf32> to vector<8x8xf32>
    %55 = vector.extract_strided_slice %54 {offsets = [0, 4], sizes = [8, 4], strides = [1, 1]} : vector<8x8xf32> to vector<8x4xf32>
    %56 = vector.extract_strided_slice %54 {offsets = [0, 0], sizes = [8, 4], strides = [1, 1]} : vector<8x8xf32> to vector<8x4xf32>
    %57 = tpu.concatenate %55, %56 in 1 : vector<8x4xf32>, vector<8x4xf32> -> vector<8x8xf32>
    %58 = arith.mulf %54, %7 : vector<8x8xf32>
    %59 = arith.mulf %57, %8 : vector<8x8xf32>
    %60 = arith.addf %58, %59 : vector<8x8xf32>
    %61 = vector.extract_strided_slice %6 {offsets = [0, 72], sizes = [8, 8], strides = [1, 1]} : vector<8x96xf32> to vector<8x8xf32>
    %62 = arith.truncf %53 : vector<8x8xf32> to vector<8x8xbf16>
    %63 = arith.truncf %60 : vector<8x8xf32> to vector<8x8xbf16>
    "tpu.trace_start"() <{level = 10 : i32, message = "nd,md->nm"}> : () -> ()
    %cst_20 = arith.constant dense<0.000000e+00> : vector<8x8xf32>
    %64 = tpu.matmul %62, %63, %cst_20 {dimension_numbers = #tpu.dot_dimension_numbers<[1], [1], [0], [0], [0, 0, 1, 0], [], []>} : vector<8x8xbf16>, vector<8x8xbf16>, vector<8x8xf32> -> vector<8x8xf32>
    "tpu.trace_stop"() : () -> ()
    %65 = arith.addf %64, %9 : vector<8x8xf32>
    %cst_21 = arith.constant dense<0xFF800000> : vector<8xf32>
    %66 = vector.multi_reduction <maximumf>, %65, %cst_21 [1] : vector<8x8xf32> to vector<8xf32>
    %67 = vector.shape_cast %66 : vector<8xf32> to vector<8x1xf32>
    %68 = vector.broadcast %67 : vector<8x1xf32> to vector<8x8xf32>
    %69 = arith.subf %65, %68 : vector<8x8xf32>
    %70 = math.exp %69 : vector<8x8xf32>
    %cst_22 = arith.constant dense<0.000000e+00> : vector<8xf32>
    %71 = vector.multi_reduction <add>, %70, %cst_22 [1] : vector<8x8xf32> to vector<8xf32>
    %72 = vector.shape_cast %71 : vector<8xf32> to vector<8x1xf32>
    %73 = arith.truncf %70 : vector<8x8xf32> to vector<8x8xbf16>
    %74 = arith.truncf %61 : vector<8x8xf32> to vector<8x8xbf16>
    %cst_23 = arith.constant dense<0.000000e+00> : vector<8x8xf32>
    %75 = tpu.matmul %73, %74, %cst_23 {dimension_numbers = #tpu.dot_dimension_numbers<[1], [0], [0], [1], [0, 0, 1, 1], [], []>} : vector<8x8xbf16>, vector<8x8xbf16>, vector<8x8xf32> -> vector<8x8xf32>
    %76 = tpu.reciprocal %72 {approx = true} : vector<8x1xf32> -> vector<8x1xf32>
    %77 = vector.broadcast %76 : vector<8x1xf32> to vector<8x8xf32>
    %78 = arith.mulf %75, %77 : vector<8x8xf32>
    %c0_24 = arith.constant 0 : index
    %c8 = arith.constant 8 : index
    %79 = vector.load %arg10[%c0_24, %c8] : memref<8x32xf32, #tpu.memory_space<vmem>>, vector<8x8xf32>
    tpu.vector_store %arg10[%c0_24, %c8], %78 {strides = array<i32>} : memref<8x32xf32, #tpu.memory_space<vmem>>, vector<8x8xf32>,
    %80 = vector.extract_strided_slice %6 {offsets = [0, 16], sizes = [8, 8], strides = [1, 1]} : vector<8x96xf32> to vector<8x8xf32>
    %81 = vector.extract_strided_slice %80 {offsets = [0, 4], sizes = [8, 4], strides = [1, 1]} : vector<8x8xf32> to vector<8x4xf32>
    %82 = vector.extract_strided_slice %80 {offsets = [0, 0], sizes = [8, 4], strides = [1, 1]} : vector<8x8xf32> to vector<8x4xf32>
    %83 = tpu.concatenate %81, %82 in 1 : vector<8x4xf32>, vector<8x4xf32> -> vector<8x8xf32>
    %84 = arith.mulf %80, %7 : vector<8x8xf32>
    %85 = arith.mulf %83, %8 : vector<8x8xf32>
    %86 = arith.addf %84, %85 : vector<8x8xf32>
    %cst_25 = arith.constant 0.353553385 : f32
    %87 = vector.broadcast %cst_25 : f32 to vector<8x8xf32>
    %88 = arith.mulf %86, %87 : vector<8x8xf32>
    %89 = vector.extract_strided_slice %6 {offsets = [0, 48], sizes = [8, 8], strides = [1, 1]} : vector<8x96xf32> to vector<8x8xf32>
    %90 = vector.extract_strided_slice %89 {offsets = [0, 4], sizes = [8, 4], strides = [1, 1]} : vector<8x8xf32> to vector<8x4xf32>
    %91 = vector.extract_strided_slice %89 {offsets = [0, 0], sizes = [8, 4], strides = [1, 1]} : vector<8x8xf32> to vector<8x4xf32>
    %92 = tpu.concatenate %90, %91 in 1 : vector<8x4xf32>, vector<8x4xf32> -> vector<8x8xf32>
    %93 = arith.mulf %89, %7 : vector<8x8xf32>
    %94 = arith.mulf %92, %8 : vector<8x8xf32>
    %95 = arith.addf %93, %94 : vector<8x8xf32>
    %96 = vector.extract_strided_slice %6 {offsets = [0, 80], sizes = [8, 8], strides = [1, 1]} : vector<8x96xf32> to vector<8x8xf32>
    %97 = arith.truncf %88 : vector<8x8xf32> to vector<8x8xbf16>
    %98 = arith.truncf %95 : vector<8x8xf32> to vector<8x8xbf16>
    "tpu.trace_start"() <{level = 10 : i32, message = "nd,md->nm"}> : () -> ()
    %cst_26 = arith.constant dense<0.000000e+00> : vector<8x8xf32>
    %99 = tpu.matmul %97, %98, %cst_26 {dimension_numbers = #tpu.dot_dimension_numbers<[1], [1], [0], [0], [0, 0, 1, 0], [], []>} : vector<8x8xbf16>, vector<8x8xbf16>, vector<8x8xf32> -> vector<8x8xf32>
    "tpu.trace_stop"() : () -> ()
    %100 = arith.addf %99, %9 : vector<8x8xf32>
    %cst_27 = arith.constant dense<0xFF800000> : vector<8xf32>
    %101 = vector.multi_reduction <maximumf>, %100, %cst_27 [1] : vector<8x8xf32> to vector<8xf32>
    %102 = vector.shape_cast %101 : vector<8xf32> to vector<8x1xf32>
    %103 = vector.broadcast %102 : vector<8x1xf32> to vector<8x8xf32>
    %104 = arith.subf %100, %103 : vector<8x8xf32>
    %105 = math.exp %104 : vector<8x8xf32>
    %cst_28 = arith.constant dense<0.000000e+00> : vector<8xf32>
    %106 = vector.multi_reduction <add>, %105, %cst_28 [1] : vector<8x8xf32> to vector<8xf32>
    %107 = vector.shape_cast %106 : vector<8xf32> to vector<8x1xf32>
    %108 = arith.truncf %105 : vector<8x8xf32> to vector<8x8xbf16>
    %109 = arith.truncf %96 : vector<8x8xf32> to vector<8x8xbf16>
    %cst_29 = arith.constant dense<0.000000e+00> : vector<8x8xf32>
    %110 = tpu.matmul %108, %109, %cst_29 {dimension_numbers = #tpu.dot_dimension_numbers<[1], [0], [0], [1], [0, 0, 1, 1], [], []>} : vector<8x8xbf16>, vector<8x8xbf16>, vector<8x8xf32> -> vector<8x8xf32>
    %111 = tpu.reciprocal %107 {approx = true} : vector<8x1xf32> -> vector<8x1xf32>
    %112 = vector.broadcast %111 : vector<8x1xf32> to vector<8x8xf32>
    %113 = arith.mulf %110, %112 : vector<8x8xf32>
    %c0_30 = arith.constant 0 : index
    %c16 = arith.constant 16 : index
    %114 = vector.load %arg10[%c0_30, %c16] : memref<8x32xf32, #tpu.memory_space<vmem>>, vector<8x8xf32>
    tpu.vector_store %arg10[%c0_30, %c16], %113 {strides = array<i32>} : memref<8x32xf32, #tpu.memory_space<vmem>>, vector<8x8xf32>,
    %115 = vector.extract_strided_slice %6 {offsets = [0, 24], sizes = [8, 8], strides = [1, 1]} : vector<8x96xf32> to vector<8x8xf32>
    %116 = vector.extract_strided_slice %115 {offsets = [0, 4], sizes = [8, 4], strides = [1, 1]} : vector<8x8xf32> to vector<8x4xf32>
    %117 = vector.extract_strided_slice %115 {offsets = [0, 0], sizes = [8, 4], strides = [1, 1]} : vector<8x8xf32> to vector<8x4xf32>
    %118 = tpu.concatenate %116, %117 in 1 : vector<8x4xf32>, vector<8x4xf32> -> vector<8x8xf32>
    %119 = arith.mulf %115, %7 : vector<8x8xf32>
    %120 = arith.mulf %118, %8 : vector<8x8xf32>
    %121 = arith.addf %119, %120 : vector<8x8xf32>
    %cst_31 = arith.constant 0.353553385 : f32
    %122 = vector.broadcast %cst_31 : f32 to vector<8x8xf32>
    %123 = arith.mulf %121, %122 : vector<8x8xf32>
    %124 = vector.extract_strided_slice %6 {offsets = [0, 56], sizes = [8, 8], strides = [1, 1]} : vector<8x96xf32> to vector<8x8xf32>
    %125 = vector.extract_strided_slice %124 {offsets = [0, 4], sizes = [8, 4], strides = [1, 1]} : vector<8x8xf32> to vector<8x4xf32>
    %126 = vector.extract_strided_slice %124 {offsets = [0, 0], sizes = [8, 4], strides = [1, 1]} : vector<8x8xf32> to vector<8x4xf32>
    %127 = tpu.concatenate %125, %126 in 1 : vector<8x4xf32>, vector<8x4xf32> -> vector<8x8xf32>
    %128 = arith.mulf %124, %7 : vector<8x8xf32>
    %129 = arith.mulf %127, %8 : vector<8x8xf32>
    %130 = arith.addf %128, %129 : vector<8x8xf32>
    %131 = vector.extract_strided_slice %6 {offsets = [0, 88], sizes = [8, 8], strides = [1, 1]} : vector<8x96xf32> to vector<8x8xf32>
    %132 = arith.truncf %123 : vector<8x8xf32> to vector<8x8xbf16>
    %133 = arith.truncf %130 : vector<8x8xf32> to vector<8x8xbf16>
    "tpu.trace_start"() <{level = 10 : i32, message = "nd,md->nm"}> : () -> ()
    %cst_32 = arith.constant dense<0.000000e+00> : vector<8x8xf32>
    %134 = tpu.matmul %132, %133, %cst_32 {dimension_numbers = #tpu.dot_dimension_numbers<[1], [1], [0], [0], [0, 0, 1, 0], [], []>} : vector<8x8xbf16>, vector<8x8xbf16>, vector<8x8xf32> -> vector<8x8xf32>
    "tpu.trace_stop"() : () -> ()
    %135 = arith.addf %134, %9 : vector<8x8xf32>
    %cst_33 = arith.constant dense<0xFF800000> : vector<8xf32>
    %136 = vector.multi_reduction <maximumf>, %135, %cst_33 [1] : vector<8x8xf32> to vector<8xf32>
    %137 = vector.shape_cast %136 : vector<8xf32> to vector<8x1xf32>
    %138 = vector.broadcast %137 : vector<8x1xf32> to vector<8x8xf32>
    %139 = arith.subf %135, %138 : vector<8x8xf32>
    %140 = math.exp %139 : vector<8x8xf32>
    %cst_34 = arith.constant dense<0.000000e+00> : vector<8xf32>
    %141 = vector.multi_reduction <add>, %140, %cst_34 [1] : vector<8x8xf32> to vector<8xf32>
    %142 = vector.shape_cast %141 : vector<8xf32> to vector<8x1xf32>
    %143 = arith.truncf %140 : vector<8x8xf32> to vector<8x8xbf16>
    %144 = arith.truncf %131 : vector<8x8xf32> to vector<8x8xbf16>
    %cst_35 = arith.constant dense<0.000000e+00> : vector<8x8xf32>
    %145 = tpu.matmul %143, %144, %cst_35 {dimension_numbers = #tpu.dot_dimension_numbers<[1], [0], [0], [1], [0, 0, 1, 1], [], []>} : vector<8x8xbf16>, vector<8x8xbf16>, vector<8x8xf32> -> vector<8x8xf32>
    %146 = tpu.reciprocal %142 {approx = true} : vector<8x1xf32> -> vector<8x1xf32>
    %147 = vector.broadcast %146 : vector<8x1xf32> to vector<8x8xf32>
    %148 = arith.mulf %145, %147 : vector<8x8xf32>
    %c0_36 = arith.constant 0 : index
    %c24 = arith.constant 24 : index
    %149 = vector.load %arg10[%c0_36, %c24] : memref<8x32xf32, #tpu.memory_space<vmem>>, vector<8x8xf32>
    tpu.vector_store %arg10[%c0_36, %c24], %148 {strides = array<i32>} : memref<8x32xf32, #tpu.memory_space<vmem>>, vector<8x8xf32>,
    %c0_37 = arith.constant 0 : index
    %c0_38 = arith.constant 0 : index
    %150 = vector.load %arg10[%c0_37, %c0_38] : memref<8x32xf32, #tpu.memory_space<vmem>>, vector<8x32xf32>
    %151 = arith.truncf %150 : vector<8x32xf32> to vector<8x32xbf16>
    %c0_39 = arith.constant 0 : index
    %c0_40 = arith.constant 0 : index
    %152 = vector.load %arg4[%c0_39, %c0_40] : memref<32x32xbf16, #tpu.memory_space<vmem>>, vector<32x32xbf16>
    %cst_41 = arith.constant dense<0.000000e+00> : vector<8x32xf32>
    %153 = tpu.matmul %151, %152, %cst_41 {dimension_numbers = #tpu.dot_dimension_numbers<[1], [0], [0], [1], [0, 0, 1, 1], [], []>} : vector<8x32xbf16>, vector<32x32xbf16>, vector<8x32xf32> -> vector<8x32xf32>
    %c0_42 = arith.constant 0 : index
    %c0_43 = arith.constant 0 : index
    %154 = vector.load %arg5[%c0_42, %c0_43] : memref<1x32xf32, #tpu.memory_space<vmem>>, vector<1x32xf32>
    %155 = vector.broadcast %154 : vector<1x32xf32> to vector<8x32xf32>
    %156 = arith.addf %153, %155 : vector<8x32xf32>
    %c0_44 = arith.constant 0 : index
    %c0_45 = arith.constant 0 : index
    %c0_46 = arith.constant 0 : index
    %157 = vector.load %arg9[%c0_44, %c0_45, %c0_46] : memref<1x8x32xf32, #tpu.memory_space<vmem>>, vector<1x8x32xf32>
    %158 = vector.shape_cast %157 : vector<1x8x32xf32> to vector<8x32xf32>
    %159 = vector.shape_cast %156 : vector<8x32xf32> to vector<1x8x32xf32>
    tpu.vector_store %arg9[%c0_44, %c0_45, %c0_46], %159 {strides = array<i32>} : memref<1x8x32xf32, #tpu.memory_space<vmem>>, vector<1x8x32xf32>,
    return
  }
  func.func @transform_0(%arg0: i32) -> (i32, i32, i32) {
    %c0_i32 = arith.constant 0 : i32
    %c0_i32_0 = arith.constant 0 : i32
    %c0_i32_1 = arith.constant 0 : i32
    return %arg0, %c0_i32, %c0_i32_0 : i32, i32, i32
  }
  func.func @transform_1(%arg0: i32) -> (i32, i32) {
    %c0_i32 = arith.constant 0 : i32
    %c0_i32_0 = arith.constant 0 : i32
    %c0_i32_1 = arith.constant 0 : i32
    return %c0_i32, %c0_i32_0 : i32, i32
  }
  func.func @transform_2(%arg0: i32) -> (i32, i32) {
    %c0_i32 = arith.constant 0 : i32
    %c0_i32_0 = arith.constant 0 : i32
    %c0_i32_1 = arith.constant 0 : i32
    return %c0_i32, %c0_i32_0 : i32, i32
  }
  func.func @transform_3(%arg0: i32) -> (i32, i32) {
    %c0_i32 = arith.constant 0 : i32
    %c0_i32_0 = arith.constant 0 : i32
    %c0_i32_1 = arith.constant 0 : i32
    return %c0_i32, %c0_i32_0 : i32, i32
  }
  func.func @transform_4(%arg0: i32) -> (i32, i32) {
    %c0_i32 = arith.constant 0 : i32
    %c0_i32_0 = arith.constant 0 : i32
    %c0_i32_1 = arith.constant 0 : i32
    return %c0_i32, %c0_i32_0 : i32, i32
  }
  func.func @transform_5(%arg0: i32) -> (i32, i32) {
    %c0_i32 = arith.constant 0 : i32
    %c0_i32_0 = arith.constant 0 : i32
    %c0_i32_1 = arith.constant 0 : i32
    return %c0_i32, %c0_i32_0 : i32, i32
  }
  func.func @transform_6(%arg0: i32) -> (i32, i32) {
    %c0_i32 = arith.constant 0 : i32
    %c0_i32_0 = arith.constant 0 : i32
    %c0_i32_1 = arith.constant 0 : i32
    return %c0_i32, %c0_i32_0 : i32, i32
  }
  func.func @transform_7(%arg0: i32) -> (i32, i32) {
    %c0_i32 = arith.constant 0 : i32
    %c0_i32_0 = arith.constant 0 : i32
    %c0_i32_1 = arith.constant 0 : i32
    return %c0_i32, %c0_i32_0 : i32, i32
  }
  func.func @transform_8(%arg0: i32) -> (i32, i32, i32) {
    %c0_i32 = arith.constant 0 : i32
    %c0_i32_0 = arith.constant 0 : i32
    %c0_i32_1 = arith.constant 0 : i32
    return %arg0, %c0_i32, %c0_i32_0 : i32, i32, i32
  }
}

</mosaic_0001>

<llo_original>
// kernel: fwd.1
$region0: #{fwd.1}
  #allocation0 [shape = 'u32[]', space=smem, size = 0x4, offset = 0x4, fixed_abs, tag = 'smem constant byte address 0x4 - core index']
  #allocation1 [shape = 'u32[144,128]{1,0:T(1,128)}', space=vmem, size = 0x12000, scoped, tag = 'internal scratch']
  #allocation2 [shape = 'f32[8,32]{1,0:T(8,128)}', space=vmem, size = 0x1000, scoped, tag = 'scratch operand']
  %s0 = inlined_call_operand.vmem [shape: bf16[2,8,32], index: 0, kind: input, shape index: {}]
  %s1 = inlined_call_operand.vmem [shape: bf16[32,96], index: 1, kind: input, shape index: {}]
  %s2 = inlined_call_operand.vmem [shape: f32[1,96], index: 2, kind: input, shape index: {}]
  %s3 = inlined_call_operand.vmem [shape: bf16[32,32], index: 3, kind: input, shape index: {}]
  %s4 = inlined_call_operand.vmem [shape: f32[1,32], index: 4, kind: input, shape index: {}]
  %s5 = inlined_call_operand.hbm [shape: f32[8,8], index: 5, kind: input, shape index: {}]
  %s6 = inlined_call_operand.hbm [shape: f32[8,8], index: 6, kind: input, shape index: {}]
  %s7 = inlined_call_operand.vmem [shape: f32[8,8], index: 7, kind: input, shape index: {}]
  %s8 = inlined_call_operand.hbm [shape: f32[2,8,32], index: 8, kind: output, shape index: {}]
  %s9 = sld [smem:[#allocation0]]
  $region73: #{fwd.1} parent=0
    _
  %s11 = ssub.s32 1, %s9
  %s12 = scalar_select 0, %s11, %s9
  $region1: #{fwd.1} parent=0
    #allocation3 [shape = 'u8[4096]{0}', space=vmem, size = 0x1000, scoped, tag = 'input window, operand 5, single buffered']
    #allocation4 [shape = 's32[2]{0}', space=sflag, size = 0x8, scoped, tag = 'scoped memory for fwd.1']
    #allocation5 [shape = 's32[2]{0}', space=sflag, size = 0x8, scoped, tag = 'scoped memory for fwd.1']
    #allocation6 [shape = 'u8[4096]{0}', space=vmem, size = 0x1000, scoped, tag = 'input window, operand 6, single buffered']
    #allocation7 [shape = 's32[1]{0}', space=sflag, size = 0x4, scoped, tag = 'scoped memory for fwd.1']
    #allocation8 [shape = 'u8[8192]{0}', space=vmem, size = 0x2000, scoped, tag = 'output window, operand 0']
    %13 = vsyncpa [#allocation4], 0
    %14 = vsyncpa [#allocation7], 0
    %15 = vsyncpa [#allocation5], 0
    %s16 = scalar_lea.sflag [#allocation5], 1
    %17 = vsyncpa %s16, 0
    loop: start=0, step=1, limit=4
    $region2: #{fwd.1} parent=1 // loop_pre_header
      _
    $region3: #{fwd.1} parent=1 // loop_header
      %s19 = sphi 0, %s23
      %p20 = scmp.ge.s32.totalorder %s19, 4
      %s29 = sphi 0, %s31
      %s32 = sphi 0, %s29
      %s33 = sphi 0, %s32
      %s49 = sphi 0, %s33
      %s53 = sphi 0, %s53
      %s55 = sphi 0, %s53
      %s56 = sphi 0, %s55
      %s70 = sphi 0, %s56
      %s74 = sphi 0, %s74
      %s76 = sphi 0, %s74
      %s77 = sphi 0, %s76
      %s91 = sphi 0, %s77
      %s95 = sphi 0, %s95
      %s97 = sphi 0, %s95
      %s98 = sphi 0, %s97
      %s112 = sphi 0, %s98
      %s116 = sphi 0, %s116
      %s118 = sphi 0, %s116
      %s119 = sphi 0, %s118
      %s133 = sphi 0, %s119
      %s137 = sphi 0, %s137
      %s139 = sphi 0, %s137
      %s140 = sphi 0, %s139
      %s154 = sphi 0, %s140
      %s158 = sphi 0, %s158
      %s160 = sphi 0, %s158
      %s161 = sphi 0, %s160
      %s175 = sphi 0, %s161
      %s179 = sphi 0, %s179
      %s181 = sphi 0, %s179
      %s182 = sphi 0, %s181
      %s196 = sphi 0, %s182
      %s202 = sphi 0, %s204
      %s205 = sphi 0, %s202
      %s206 = sphi 0, %s205
      %s222 = sphi 0, %s206
    $region4: #{fwd.1} parent=1 // loop_header_branch
      %22 = sbr.rel (%p20) target = $region8
    $region5: #{fwd.1} parent=1 // loop_body
      %s24 = ssub.s32 %s19, 1
      %s25 = ssub.s32 %s19, 2
      %s26 = sadd.s32 %s19, 1
      %s27 = ssub.s32 %s19, %s26
      %p28 = scmp.eq.s32.totalorder %s27, 0
      %s30 = sadd.s32 %s29, 1
      %s31 = scalar_select %p28, %s29, %s30
      %p34 = pneg %p28
      %p35 = scmp.eq.s32.totalorder %s19, 1
      %p36 = por %p34, %p35
      %p37 = scmp.ne.s32.totalorder %s29, %s32
      %p38 = scmp.eq.s32.totalorder %s19, 0
      %p39 = por %p37, %p38
      %p40 = scmp.ne.s32.totalorder %s29, %s32
      %p41 = scmp.eq.s32.totalorder %s24, 1
      %p42 = por %p40, %p41
      %p43 = scmp.ne.s32.totalorder %s32, %s33
      %p44 = scmp.eq.s32.totalorder %s24, 0
      %p45 = por %p43, %p44
      %p46 = scmp.ne.s32.totalorder %s32, %s33
      %p47 = scmp.eq.s32.totalorder %s25, 1
      %p48 = por %p46, %p47
      %p50 = scmp.ne.s32.totalorder %s33, %s49
      %p51 = scmp.eq.s32.totalorder %s25, 0
      %p52 = por %p50, %p51
      %s54 = sadd.s32 %s53, 1
      %p57 = scmp.eq.s32.totalorder %s19, 1
      %p58 = scmp.ne.s32.totalorder %s53, %s55
      %p59 = scmp.eq.s32.totalorder %s19, 0
      %p60 = por %p58, %p59
      %p61 = scmp.ne.s32.totalorder %s53, %s55
      %p62 = scmp.eq.s32.totalorder %s24, 1
      %p63 = por %p61, %p62
      %p64 = scmp.ne.s32.totalorder %s55, %s56
      %p65 = scmp.eq.s32.totalorder %s24, 0
      %p66 = por %p64, %p65
      %p67 = scmp.ne.s32.totalorder %s55, %s56
      %p68 = scmp.eq.s32.totalorder %s25, 1
      %p69 = por %p67, %p68
      %p71 = scmp.ne.s32.totalorder %s56, %s70
      %p72 = scmp.eq.s32.totalorder %s25, 0
      %p73 = por %p71, %p72
      %s75 = sadd.s32 %s74, 1
      %p78 = scmp.eq.s32.totalorder %s19, 1
      %p79 = scmp.ne.s32.totalorder %s74, %s76
      %p80 = scmp.eq.s32.totalorder %s19, 0
      %p81 = por %p79, %p80
      %p82 = scmp.ne.s32.totalorder %s74, %s76
      %p83 = scmp.eq.s32.totalorder %s24, 1
      %p84 = por %p82, %p83
      %p85 = scmp.ne.s32.totalorder %s76, %s77
      %p86 = scmp.eq.s32.totalorder %s24, 0
      %p87 = por %p85, %p86
      %p88 = scmp.ne.s32.totalorder %s76, %s77
      %p89 = scmp.eq.s32.totalorder %s25, 1
      %p90 = por %p88, %p89
      %p92 = scmp.ne.s32.totalorder %s77, %s91
      %p93 = scmp.eq.s32.totalorder %s25, 0
      %p94 = por %p92, %p93
      %s96 = sadd.s32 %s95, 1
      %p99 = scmp.eq.s32.totalorder %s19, 1
      %p100 = scmp.ne.s32.totalorder %s95, %s97
      %p101 = scmp.eq.s32.totalorder %s19, 0
      %p102 = por %p100, %p101
      %p103 = scmp.ne.s32.totalorder %s95, %s97
      %p104 = scmp.eq.s32.totalorder %s24, 1
      %p105 = por %p103, %p104
      %p106 = scmp.ne.s32.totalorder %s97, %s98
      %p107 = scmp.eq.s32.totalorder %s24, 0
      %p108 = por %p106, %p107
      %p109 = scmp.ne.s32.totalorder %s97, %s98
      %p110 = scmp.eq.s32.totalorder %s25, 1
      %p111 = por %p109, %p110
      %p113 = scmp.ne.s32.totalorder %s98, %s112
      %p114 = scmp.eq.s32.totalorder %s25, 0
      %p115 = por %p113, %p114
      %s117 = sadd.s32 %s116, 1
      %p120 = scmp.eq.s32.totalorder %s19, 1
      %p121 = scmp.ne.s32.totalorder %s116, %s118
      %p122 = scmp.eq.s32.totalorder %s19, 0
      %p123 = por %p121, %p122
      %p124 = scmp.ne.s32.totalorder %s116, %s118
      %p125 = scmp.eq.s32.totalorder %s24, 1
      %p126 = por %p124, %p125
      %p127 = scmp.ne.s32.totalorder %s118, %s119
      %p128 = scmp.eq.s32.totalorder %s24, 0
      %p129 = por %p127, %p128
      %p130 = scmp.ne.s32.totalorder %s118, %s119
      %p131 = scmp.eq.s32.totalorder %s25, 1
      %p132 = por %p130, %p131
      %p134 = scmp.ne.s32.totalorder %s119, %s133
      %p135 = scmp.eq.s32.totalorder %s25, 0
      %p136 = por %p134, %p135
      %s138 = sadd.s32 %s137, 1
      %p141 = scmp.eq.s32.totalorder %s19, 1
      %p142 = scmp.ne.s32.totalorder %s137, %s139
      %p143 = scmp.eq.s32.totalorder %s19, 0
      %p144 = por %p142, %p143
      %p145 = scmp.ne.s32.totalorder %s137, %s139
      %p146 = scmp.eq.s32.totalorder %s24, 1
      %p147 = por %p145, %p146
      %p148 = scmp.ne.s32.totalorder %s139, %s140
      %p149 = scmp.eq.s32.totalorder %s24, 0
      %p150 = por %p148, %p149
      %p151 = scmp.ne.s32.totalorder %s139, %s140
      %p152 = scmp.eq.s32.totalorder %s25, 1
      %p153 = por %p151, %p152
      %p155 = scmp.ne.s32.totalorder %s140, %s154
      %p156 = scmp.eq.s32.totalorder %s25, 0
      %p157 = por %p155, %p156
      %s159 = sadd.s32 %s158, 1
      %p162 = scmp.eq.s32.totalorder %s19, 1
      %p163 = scmp.ne.s32.totalorder %s158, %s160
      %p164 = scmp.eq.s32.totalorder %s19, 0
      %p165 = por %p163, %p164
      %p166 = scmp.ne.s32.totalorder %s158, %s160
      %p167 = scmp.eq.s32.totalorder %s24, 1
      %p168 = por %p166, %p167
      %p169 = scmp.ne.s32.totalorder %s160, %s161
      %p170 = scmp.eq.s32.totalorder %s24, 0
      %p171 = por %p169, %p170
      %p172 = scmp.ne.s32.totalorder %s160, %s161
      %p173 = scmp.eq.s32.totalorder %s25, 1
      %p174 = por %p172, %p173
      %p176 = scmp.ne.s32.totalorder %s161, %s175
      %p177 = scmp.eq.s32.totalorder %s25, 0
      %p178 = por %p176, %p177
      %s180 = sadd.s32 %s179, 1
      %p183 = scmp.eq.s32.totalorder %s19, 1
      %p184 = scmp.ne.s32.totalorder %s179, %s181
      %p185 = scmp.eq.s32.totalorder %s19, 0
      %p186 = por %p184, %p185
      %p187 = scmp.ne.s32.totalorder %s179, %s181
      %p188 = scmp.eq.s32.totalorder %s24, 1
      %p189 = por %p187, %p188
      %p190 = scmp.ne.s32.totalorder %s181, %s182
      %p191 = scmp.eq.s32.totalorder %s24, 0
      %p192 = por %p190, %p191
      %p193 = scmp.ne.s32.totalorder %s181, %s182
      %p194 = scmp.eq.s32.totalorder %s25, 1
      %p195 = por %p193, %p194
      %p197 = scmp.ne.s32.totalorder %s182, %s196
      %p198 = scmp.eq.s32.totalorder %s25, 0
      %p199 = por %p197, %p198
      %s200 = ssub.s32 %s19, %s26
      %p201 = scmp.eq.s32.totalorder %s200, 0
      %s203 = sadd.s32 %s202, 1
      %s204 = scalar_select %p201, %s202, %s203
      %p207 = pneg %p201
      %p208 = scmp.eq.s32.totalorder %s19, 1
      %p209 = por %p207, %p208
      %p210 = scmp.ne.s32.totalorder %s202, %s205
      %p211 = scmp.eq.s32.totalorder %s19, 0
      %p212 = por %p210, %p211
      %p213 = scmp.ne.s32.totalorder %s202, %s205
      %p214 = scmp.eq.s32.totalorder %s24, 1
      %p215 = por %p213, %p214
      %p216 = scmp.ne.s32.totalorder %s205, %s206
      %p217 = scmp.eq.s32.totalorder %s24, 0
      %p218 = por %p216, %p217
      %p219 = scmp.ne.s32.totalorder %s205, %s206
      %p220 = scmp.eq.s32.totalorder %s25, 1
      %p221 = por %p219, %p220
      %p223 = scmp.ne.s32.totalorder %s206, %s222
      %p224 = scmp.eq.s32.totalorder %s25, 0
      %p225 = por %p223, %p224
      %p226 = scmp.le.s32.totalorder 1, %s19
      %p227 = scmp.lt.s32.totalorder %s19, 3
      %p228 = pnand %p226, %p227
      %p229 = pneg %p228
      // Predicated region
      $region9: #{fwd.1} parent=5 // pred_check
        _
      $region10: #{fwd.1} parent=5 // pred_check_branch
        %231 = sbr.rel (%p228) target = $region12
      $region11: #{fwd.1} parent=5 // pred_region
        %s232 = ssub.s32 %s19, 1
        // Predicated region
        $region13: #{fwd.1} parent=11 // pred_check
          %p233 = pneg %p66
        $region14: #{fwd.1} parent=11 // pred_check_branch
          %235 = sbr.rel (%p233) target = $region16
        $region15: #{fwd.1} parent=11 // pred_region
          _
        $region16: #{fwd.1} parent=11 // pred_fallthru
          _
        // Predicated region
        $region17: #{fwd.1} parent=11 // pred_check
          %p236 = pneg %p87
        $region18: #{fwd.1} parent=11 // pred_check_branch
          %238 = sbr.rel (%p236) target = $region20
        $region19: #{fwd.1} parent=11 // pred_region
          _
        $region20: #{fwd.1} parent=11 // pred_fallthru
          _
        // Predicated region
        $region21: #{fwd.1} parent=11 // pred_check
          %p239 = pneg %p108
        $region22: #{fwd.1} parent=11 // pred_check_branch
          %241 = sbr.rel (%p239) target = $region24
        $region23: #{fwd.1} parent=11 // pred_region
          _
        $region24: #{fwd.1} parent=11 // pred_fallthru
          _
        // Predicated region
        $region25: #{fwd.1} parent=11 // pred_check
          %p242 = pneg %p129
        $region26: #{fwd.1} parent=11 // pred_check_branch
          %244 = sbr.rel (%p242) target = $region28
        $region27: #{fwd.1} parent=11 // pred_region
          _
        $region28: #{fwd.1} parent=11 // pred_fallthru
          _
        // Predicated region
        $region29: #{fwd.1} parent=11 // pred_check
          %p245 = pneg %p150
        $region30: #{fwd.1} parent=11 // pred_check_branch
          %247 = sbr.rel (%p245) target = $region32
        $region31: #{fwd.1} parent=11 // pred_region
          %s249 = ssub.s32 128, 128
          %250 = vsyncadd [#allocation4], %s249
          %s252 = sshll.u32 [#allocation3], 4
          %s253 = int_to_ptr.vmem [resolvable:$true] %s252
          %255 = dma.hbm_to_vmem [thread:$0]  %s5, 128, %s253, [#allocation4]
        $region32: #{fwd.1} parent=11 // pred_fallthru
          _
        // Predicated region
        $region33: #{fwd.1} parent=11 // pred_check
          %p256 = pneg %p171
        $region34: #{fwd.1} parent=11 // pred_check_branch
          %258 = sbr.rel (%p256) target = $region36
        $region35: #{fwd.1} parent=11 // pred_region
          %s260 = ssub.s32 128, 128
          %261 = vsyncadd [#allocation7], %s260
          %s263 = sshll.u32 [#allocation6], 4
          %s264 = int_to_ptr.vmem [resolvable:$true] %s263
          %266 = dma.hbm_to_vmem [thread:$0]  %s6, 128, %s264, [#allocation7]
        $region36: #{fwd.1} parent=11 // pred_fallthru
          _
        // Predicated region
        $region37: #{fwd.1} parent=11 // pred_check
          %p267 = pneg %p192
        $region38: #{fwd.1} parent=11 // pred_check_branch
          %269 = sbr.rel (%p267) target = $region40
        $region39: #{fwd.1} parent=11 // pred_region
          _
        $region40: #{fwd.1} parent=11 // pred_fallthru
          _
      $region12: #{fwd.1} parent=5 // pred_fallthru
        _
      %p270 = scmp.lt.s32.totalorder %s19, 2
      // Predicated region
      $region41: #{fwd.1} parent=5 // pred_check
        %p271 = pneg %p270
      $region42: #{fwd.1} parent=5 // pred_check_branch
        %273 = sbr.rel (%p271) target = $region44
      $region43: #{fwd.1} parent=5 // pred_region
        // Predicated region
        $region45: #{fwd.1} parent=43 // pred_check
          %p274 = pneg %p39
        $region46: #{fwd.1} parent=43 // pred_check_branch
          %276 = sbr.rel (%p274) target = $region48
        $region47: #{fwd.1} parent=43 // pred_region
          %p277 = scmp.lt.s32.totalorder %s19, 1
          %s278 = scalar_select %p277, %s19, 1
          %s279 = smul.addr %s278, 4
          %s280 = scalar_lea.vmem %s0, %s279
        $region48: #{fwd.1} parent=43 // pred_fallthru
          _
      $region44: #{fwd.1} parent=5 // pred_fallthru
        _
      %p281 = scmp.le.s32.totalorder 1, %s19
      %p282 = scmp.lt.s32.totalorder %s19, 3
      %p283 = pnand %p281, %p282
      %p284 = pneg %p283
      // Predicated region
      $region49: #{fwd.1} parent=5 // pred_check
        _
      $region50: #{fwd.1} parent=5 // pred_check_branch
        %286 = sbr.rel (%p283) target = $region52
      $region51: #{fwd.1} parent=5 // pred_region
        %s287 = ssub.s32 %s19, 1
        // Predicated region
        $region53: #{fwd.1} parent=51 // pred_check
          %p288 = pneg %p150
        $region54: #{fwd.1} parent=51 // pred_check_branch
          %290 = sbr.rel (%p288) target = $region56
        $region55: #{fwd.1} parent=51 // pred_region
          %291 = dma.done [#allocation4], 128
        $region56: #{fwd.1} parent=51 // pred_fallthru
          _
        // Predicated region
        $region57: #{fwd.1} parent=51 // pred_check
          %p292 = pneg %p171
        $region58: #{fwd.1} parent=51 // pred_check_branch
          %294 = sbr.rel (%p292) target = $region60
        $region59: #{fwd.1} parent=51 // pred_region
          %295 = dma.done [#allocation7], 128
        $region60: #{fwd.1} parent=51 // pred_fallthru
          _
        %p296 = scmp.lt.s32.totalorder %s24, 1
        %s297 = scalar_select %p296, %s24, 1
        %s298 = smul.addr %s297, 4
        %s299 = scalar_lea.vmem %s0, %s298
        %p300 = pneg %p45
        %p301 = pneg %p42
        %p302 = pneg %p66
        %p303 = pneg %p63
        %p304 = pneg %p87
        %p305 = pneg %p84
        %p306 = pneg %p108
        %p307 = pneg %p105
        %p308 = pneg %p129
        %p309 = pneg %p126
        %p310 = pneg %p150
        %p311 = pneg %p147
        %p312 = pneg %p171
        %p313 = pneg %p168
        %p314 = pneg %p192
        %p315 = pneg %p189
        %p316 = pneg %p218
        %p317 = pneg %p215
        %s318 = sand.u32 %s205, 1
        %s319 = scalar_lea.sflag [#allocation5], %s318
        %s320 = sand.u32 %s205, 1
        %s321 = smul.addr %s320, 8
        %s322 = scalar_lea.vmem [#allocation8], %s321
        %p323 = scmp.lt.s32.totalorder %s24, 1
        %s324 = scalar_select %p323, %s24, 1
        %s325 = smul.addr %s324, 4
        %s326 = scalar_lea.vmem %s0, %s325
        %v328 = vld [vmem:[%s326] sm:$0xf]
        %v329 = vld [vmem:[%s1] sm:$0xf]
        %v330 = vld [vmem:[%s1 + $0x4] sm:$0xf]
        %v331 = vld [vmem:[%s1 + $0x8] sm:$0xf]
        %v332 = vld [vmem:[%s1 + $0xc] sm:$0xf]
        %v333 = vld [vmem:[%s2] sm:$0x1]
        %v335 = vlaneseq
        %v336 = vshrl.u32 %v335, 7
        %v337 = vsub.s32 0, %v336
        %v338 = vrot.slane %v333, %v337
        %v344 = vunpack.c.l.b16 %v329
        %v345 = vunpack.c.l.b16 %v330
        %v346 = vunpack.c.l.b16 %v331
        %v347 = vunpack.c.l.b16 %v332
        %v348 = vpack.c.b16 %v345, %v344
        %v349 = vpack.c.b16 %v347, %v346
        %vm352 = vcmask 261120
        %v354 = vsel %vm352, %v328, 0
        %356 = vmatprep.subr.bf16.mxu0 0
        %357 = vmatpush1.bf16.msra.mxu0 %v348
        %358 = vmatprep.subr.bf16.mxu0 0
        %359 = vmatpush1.bf16.msra.mxu0 %v349
        %360 = vmatprep.subr.bf16.mxu0 0
        %361 = vmatpush1.bf16.msra.mxu0 0
        %362 = vmatprep.subr.bf16.mxu0 0
        %363 = vmatpush1.bf16.msra.mxu0 0
        %364 = vmatprep.subr.bf16.mxu0 0
        %365 = vmatpush1.bf16.msra.mxu0 0
        %366 = vmatprep.subr.bf16.mxu0 0
        %367 = vmatpush1.bf16.msra.mxu0 0
        %368 = vmatprep.subr.bf16.mxu0 0
        %369 = vmatpush1.bf16.msra.mxu0 0
        %370 = vmatprep.subr.bf16.mxu0 0
        %371 = vmatpush1.bf16.msra.mxu0 0
        %372 = vmatprep.subr.bf16.mxu0 0
        %373 = vmatpush1.bf16.msra.mxu0 0
        %374 = vmatprep.subr.bf16.mxu0 0
        %375 = vmatpush1.bf16.msra.mxu0 0
        %376 = vmatprep.subr.bf16.mxu0 0
        %377 = vmatpush1.bf16.msra.mxu0 0
        %378 = vmatprep.subr.bf16.mxu0 0
        %379 = vmatpush1.bf16.msra.mxu0 0
        %380 = vmatprep.subr.bf16.mxu0 0
        %381 = vmatpush1.bf16.msra.mxu0 0
        %382 = vmatprep.subr.bf16.mxu0 0
        %383 = vmatpush1.bf16.msra.mxu0 0
        %384 = vmatprep.subr.bf16.mxu0 0
        %385 = vmatpush1.bf16.msra.mxu0 0
        %386 = vmatprep.subr.bf16.mxu0 0
        %387 = vmatpush1.bf16.msra.mxu0 0
        %388 = vmatprep.mubr.bf16.mxu0 0
        %389 = vmatmul.mubr.bf16.gmra.mrb[0].mxu0 %v354
        %v390 = vpop.f32.mrb[0].mxu0
        %v391 = vadd.f32 %v338, %v390
        %v392 = vpop.f32.mrb[0].mxu0
        %v393 = vpop.f32.mrb[0].mxu0
        %v394 = vpop.f32.mrb[0].mxu0
        %395 = vdwg.mxu0
        %v396 = vld [vmem:[#allocation3] sm:$0xff]
        %v397 = vld [vmem:[#allocation6] sm:$0xff]
        %v398 = vld [vmem:[%s7] sm:$0xff]
        %400 = vrot.lane.b32.xlu0 %v391, 124
        %v401 = vpop.permute.xlu0 %400
        %403 = vrot.lane.b32.xlu0 %v391, 4
        %v404 = vpop.permute.xlu0 %403
        %vm406 = vcmask 31744
        %v407 = vsel %vm406, %v401, %v404
        %v408 = vmul.f32 %v391, %v396
        %v409 = vmul.f32 %v407, %v397
        %v410 = vadd.f32 %v408, %v409
        %v411 = vmul.f32 %v410, 0.35355338
        %412 = vrot.lane.b32.xlu0 %v391, 92
        %v413 = vpop.permute.xlu0 %412
        %415 = vrot.lane.b32.xlu0 %v391, 100
        %v416 = vpop.permute.xlu0 %415
        %v418 = vsel %vm406, %v413, %v416
        %420 = vrot.lane.b32.xlu0 %v396, 32
        %v421 = vpop.permute.xlu0 %420
        %v423 = vmul.f32 %v391, %v421
        %v424 = vmul.f32 %v418, %v397
        %426 = vrot.lane.b32.xlu0 %v424, 32
        %v427 = vpop.permute.xlu0 %426
        %v429 = vadd.f32 %v423, %v427
        %v430 = vpack.c.bf16 %v411, %v411
        %v431 = vpack.c.bf16 %v429, %v429
        %433 = vrot.lane.b32.xlu0 %v431, 96
        %v434 = vpop.permute.xlu0 %433
        %vm435 = vcmask 64512
        %v437 = vsel %vm435, %v430, 0
        %v440 = vsel %vm435, %v434, 0
        %442 = vmatprep.subr.bf16.mxu0 0
        %443 = vmatpush1.bf16.xpose.msra.mxu0 %v440
        %444 = vmatprep.subr.bf16.mxu0 0
        %445 = vmatpush1.bf16.xpose.msra.mxu0 0
        %446 = vmatprep.subr.bf16.mxu0 0
        %447 = vmatpush1.bf16.xpose.msra.mxu0 0
        %448 = vmatprep.subr.bf16.mxu0 0
        %449 = vmatpush1.bf16.xpose.msra.mxu0 0
        %450 = vmatprep.subr.bf16.mxu0 0
        %451 = vmatpush1.bf16.xpose.msra.mxu0 0
        %452 = vmatprep.subr.bf16.mxu0 0
        %453 = vmatpush1.bf16.xpose.msra.mxu0 0
        %454 = vmatprep.subr.bf16.mxu0 0
        %455 = vmatpush1.bf16.xpose.msra.mxu0 0
        %456 = vmatprep.subr.bf16.mxu0 0
        %457 = vmatpush1.bf16.xpose.msra.mxu0 0
        %458 = vmatprep.subr.bf16.mxu0 0
        %459 = vmatpush1.bf16.xpose.msra.mxu0 0
        %460 = vmatprep.subr.bf16.mxu0 0
        %461 = vmatpush1.bf16.xpose.msra.mxu0 0
        %462 = vmatprep.subr.bf16.mxu0 0
        %463 = vmatpush1.bf16.xpose.msra.mxu0 0
        %464 = vmatprep.subr.bf16.mxu0 0
        %465 = vmatpush1.bf16.xpose.msra.mxu0 0
        %466 = vmatprep.subr.bf16.mxu0 0
        %467 = vmatpush1.bf16.xpose.msra.mxu0 0
        %468 = vmatprep.subr.bf16.mxu0 0
        %469 = vmatpush1.bf16.xpose.msra.mxu0 0
        %470 = vmatprep.subr.bf16.mxu0 0
        %471 = vmatpush1.bf16.xpose.msra.mxu0 0
        %472 = vmatprep.subr.bf16.mxu0 0
        %473 = vmatpush1.bf16.xpose.msra.mxu0 0
        %474 = vmatprep.mubr.bf16.mxu0 0
        %475 = vmatmul.mubr.bf16.gmra.mrb[0].mxu0 %v437
        %v476 = vpop.f32.mrb[0].mxu0
        %v477 = vadd.f32 %v398, %v476
        %v478 = vpop.f32.mrb[0].mxu0
        %v479 = vpop.f32.mrb[0].mxu0
        %v480 = vpop.f32.mrb[0].mxu0
        %481 = vdwg.mxu0
        %v482 = vsel %vm435, %v477, -inf
        %483 = vmax.xlane.f32.xlu0 %v482
        %v484 = vpop.xlane.xlu0 %483
        %v485 = vsub.f32 %v477, %v484
        %v486 = vmul.f32 %v485, 1.442695
        %v487 = vpow.pop %v486
        %v488 = vsel %vm435, %v487, 0.0
        %489 = vadd.xlane.f32.xlu0 %v488
        %v490 = vpop.xlane.xlu0 %489
        %v491 = vpack.c.bf16 %v487, %v487
        %v492 = vpack.c.bf16 %v391, %v391
        %494 = vrot.lane.b32.xlu0 %v492, 64
        %v495 = vpop.permute.xlu0 %494
        %v497 = vsel %vm435, %v491, 0
        %vm499 = vcmask 1043456
        %v501 = vsel %vm499, %v495, 0
        %503 = vmatprep.subr.bf16.mxu0 0
        %504 = vmatpush1.bf16.msra.mxu0 %v501
        %505 = vmatprep.subr.bf16.mxu0 0
        %506 = vmatpush1.bf16.msra.mxu0 0
        %507 = vmatprep.subr.bf16.mxu0 0
        %508 = vmatpush1.bf16.msra.mxu0 0
        %509 = vmatprep.subr.bf16.mxu0 0
        %510 = vmatpush1.bf16.msra.mxu0 0
        %511 = vmatprep.subr.bf16.mxu0 0
        %512 = vmatpush1.bf16.msra.mxu0 0
        %513 = vmatprep.subr.bf16.mxu0 0
        %514 = vmatpush1.bf16.msra.mxu0 0
        %515 = vmatprep.subr.bf16.mxu0 0
        %516 = vmatpush1.bf16.msra.mxu0 0
        %517 = vmatprep.subr.bf16.mxu0 0
        %518 = vmatpush1.bf16.msra.mxu0 0
        %519 = vmatprep.subr.bf16.mxu0 0
        %520 = vmatpush1.bf16.msra.mxu0 0
        %521 = vmatprep.subr.bf16.mxu0 0
        %522 = vmatpush1.bf16.msra.mxu0 0
        %523 = vmatprep.subr.bf16.mxu0 0
        %524 = vmatpush1.bf16.msra.mxu0 0
        %525 = vmatprep.subr.bf16.mxu0 0
        %526 = vmatpush1.bf16.msra.mxu0 0
        %527 = vmatprep.subr.bf16.mxu0 0
        %528 = vmatpush1.bf16.msra.mxu0 0
        %529 = vmatprep.subr.bf16.mxu0 0
        %530 = vmatpush1.bf16.msra.mxu0 0
        %531 = vmatprep.subr.bf16.mxu0 0
        %532 = vmatpush1.bf16.msra.mxu0 0
        %533 = vmatprep.subr.bf16.mxu0 0
        %534 = vmatpush1.bf16.msra.mxu0 0
        %535 = vmatprep.mubr.bf16.mxu0 0
        %536 = vmatmul.mubr.bf16.gmra.mrb[0].mxu0 %v497
        %v537 = vpop.f32.mrb[0].mxu0
        %v538 = vadd.f32 0.0, %v537
        %v539 = vpop.f32.mrb[0].mxu0
        %v540 = vpop.f32.mrb[0].mxu0
        %v541 = vpop.f32.mrb[0].mxu0
        %542 = vdwg.mxu0
        %v543 = vrcp.pop %v490
        %v544 = vmul.f32 %v538, %v543
        %545 = vst.msk [vmem:[#allocation2] sm:$0xff] %vm435, %v544
        %546 = vrot.lane.b32.xlu0 %v391, 116
        %v547 = vpop.permute.xlu0 %546
        %v549 = vsel %vm406, %v547, %v401
        %550 = vrot.lane.b32.xlu0 %v396, 8
        %v551 = vpop.permute.xlu0 %550
        %v553 = vmul.f32 %v391, %v551
        %v554 = vmul.f32 %v549, %v397
        %556 = vrot.lane.b32.xlu0 %v554, 8
        %v557 = vpop.permute.xlu0 %556
        %v559 = vadd.f32 %v553, %v557
        %v560 = vmul.f32 %v559, 0.35355338
        %561 = vrot.lane.b32.xlu0 %v391, 84
        %v562 = vpop.permute.xlu0 %561
        %v564 = vsel %vm406, %v562, %v413
        %565 = vrot.lane.b32.xlu0 %v396, 40
        %v566 = vpop.permute.xlu0 %565
        %v568 = vmul.f32 %v391, %v566
        %v569 = vmul.f32 %v564, %v397
        %571 = vrot.lane.b32.xlu0 %v569, 40
        %v572 = vpop.permute.xlu0 %571
        %v574 = vadd.f32 %v568, %v572
        %v575 = vpack.c.bf16 %v560, %v560
        %v576 = vpack.c.bf16 %v574, %v574
        %578 = vrot.lane.b32.xlu0 %v575, 120
        %v579 = vpop.permute.xlu0 %578
        %581 = vrot.lane.b32.xlu0 %v576, 88
        %v582 = vpop.permute.xlu0 %581
        %v584 = vsel %vm435, %v579, 0
        %v587 = vsel %vm435, %v582, 0
        %589 = vmatprep.subr.bf16.mxu0 0
        %590 = vmatpush1.bf16.xpose.msra.mxu0 %v587
        %591 = vmatprep.subr.bf16.mxu0 0
        %592 = vmatpush1.bf16.xpose.msra.mxu0 0
        %593 = vmatprep.subr.bf16.mxu0 0
        %594 = vmatpush1.bf16.xpose.msra.mxu0 0
        %595 = vmatprep.subr.bf16.mxu0 0
        %596 = vmatpush1.bf16.xpose.msra.mxu0 0
        %597 = vmatprep.subr.bf16.mxu0 0
        %598 = vmatpush1.bf16.xpose.msra.mxu0 0
        %599 = vmatprep.subr.bf16.mxu0 0
        %600 = vmatpush1.bf16.xpose.msra.mxu0 0
        %601 = vmatprep.subr.bf16.mxu0 0
        %602 = vmatpush1.bf16.xpose.msra.mxu0 0
        %603 = vmatprep.subr.bf16.mxu0 0
        %604 = vmatpush1.bf16.xpose.msra.mxu0 0
        %605 = vmatprep.subr.bf16.mxu0 0
        %606 = vmatpush1.bf16.xpose.msra.mxu0 0
        %607 = vmatprep.subr.bf16.mxu0 0
        %608 = vmatpush1.bf16.xpose.msra.mxu0 0
        %609 = vmatprep.subr.bf16.mxu0 0
        %610 = vmatpush1.bf16.xpose.msra.mxu0 0
        %611 = vmatprep.subr.bf16.mxu0 0
        %612 = vmatpush1.bf16.xpose.msra.mxu0 0
        %613 = vmatprep.subr.bf16.mxu0 0
        %614 = vmatpush1.bf16.xpose.msra.mxu0 0
        %615 = vmatprep.subr.bf16.mxu0 0
        %616 = vmatpush1.bf16.xpose.msra.mxu0 0
        %617 = vmatprep.subr.bf16.mxu0 0
        %618 = vmatpush1.bf16.xpose.msra.mxu0 0
        %619 = vmatprep.subr.bf16.mxu0 0
        %620 = vmatpush1.bf16.xpose.msra.mxu0 0
        %621 = vmatprep.mubr.bf16.mxu0 0
        %622 = vmatmul.mubr.bf16.gmra.mrb[0].mxu0 %v584
        %v623 = vpop.f32.mrb[0].mxu0
        %v624 = vadd.f32 %v398, %v623
        %v625 = vpop.f32.mrb[0].mxu0
        %v626 = vpop.f32.mrb[0].mxu0
        %v627 = vpop.f32.mrb[0].mxu0
        %628 = vdwg.mxu0
        %v629 = vsel %vm435, %v624, -inf
        %630 = vmax.xlane.f32.xlu0 %v629
        %v631 = vpop.xlane.xlu0 %630
        %v632 = vsub.f32 %v624, %v631
        %v633 = vmul.f32 %v632, 1.442695
        %v634 = vpow.pop %v633
        %v635 = vsel %vm435, %v634, 0.0
        %636 = vadd.xlane.f32.xlu0 %v635
        %v637 = vpop.xlane.xlu0 %636
        %v638 = vpack.c.bf16 %v634, %v634
        %639 = vrot.lane.b32.xlu0 %v492, 56
        %v640 = vpop.permute.xlu0 %639
        %v642 = vsel %vm435, %v638, 0
        %v645 = vsel %vm499, %v640, 0
        %647 = vmatprep.subr.bf16.mxu0 0
        %648 = vmatpush1.bf16.msra.mxu0 %v645
        %649 = vmatprep.subr.bf16.mxu0 0
        %650 = vmatpush1.bf16.msra.mxu0 0
        %651 = vmatprep.subr.bf16.mxu0 0
        %652 = vmatpush1.bf16.msra.mxu0 0
        %653 = vmatprep.subr.bf16.mxu0 0
        %654 = vmatpush1.bf16.msra.mxu0 0
        %655 = vmatprep.subr.bf16.mxu0 0
        %656 = vmatpush1.bf16.msra.mxu0 0
        %657 = vmatprep.subr.bf16.mxu0 0
        %658 = vmatpush1.bf16.msra.mxu0 0
        %659 = vmatprep.subr.bf16.mxu0 0
        %660 = vmatpush1.bf16.msra.mxu0 0
        %661 = vmatprep.subr.bf16.mxu0 0
        %662 = vmatpush1.bf16.msra.mxu0 0
        %663 = vmatprep.subr.bf16.mxu0 0
        %664 = vmatpush1.bf16.msra.mxu0 0
        %665 = vmatprep.subr.bf16.mxu0 0
        %666 = vmatpush1.bf16.msra.mxu0 0
        %667 = vmatprep.subr.bf16.mxu0 0
        %668 = vmatpush1.bf16.msra.mxu0 0
        %669 = vmatprep.subr.bf16.mxu0 0
        %670 = vmatpush1.bf16.msra.mxu0 0
        %671 = vmatprep.subr.bf16.mxu0 0
        %672 = vmatpush1.bf16.msra.mxu0 0
        %673 = vmatprep.subr.bf16.mxu0 0
        %674 = vmatpush1.bf16.msra.mxu0 0
        %675 = vmatprep.subr.bf16.mxu0 0
        %676 = vmatpush1.bf16.msra.mxu0 0
        %677 = vmatprep.subr.bf16.mxu0 0
        %678 = vmatpush1.bf16.msra.mxu0 0
        %679 = vmatprep.mubr.bf16.mxu0 0
        %680 = vmatmul.mubr.bf16.gmra.mrb[0].mxu0 %v642
        %v681 = vpop.f32.mrb[0].mxu0
        %v682 = vadd.f32 0.0, %v681
        %v683 = vpop.f32.mrb[0].mxu0
        %v684 = vpop.f32.mrb[0].mxu0
        %v685 = vpop.f32.mrb[0].mxu0
        %686 = vdwg.mxu0
        %v687 = vrcp.pop %v637
        %v688 = vmul.f32 %v682, %v687
        %690 = vrot.lane.b32.xlu0 %v688, 8
        %v691 = vpop.permute.xlu0 %690
        %vm693 = vcmask 130112
        %694 = vst.msk [vmem:[#allocation2] sm:$0xff] %vm693, %v691
        %695 = vrot.lane.b32.xlu0 %v391, 108
        %v696 = vpop.permute.xlu0 %695
        %v698 = vsel %vm406, %v696, %v547
        %699 = vrot.lane.b32.xlu0 %v396, 16
        %v700 = vpop.permute.xlu0 %699
        %v702 = vmul.f32 %v391, %v700
        %v703 = vmul.f32 %v698, %v397
        %705 = vrot.lane.b32.xlu0 %v703, 16
        %v706 = vpop.permute.xlu0 %705
        %v708 = vadd.f32 %v702, %v706
        %v709 = vmul.f32 %v708, 0.35355338
        %710 = vrot.lane.b32.xlu0 %v391, 76
        %v711 = vpop.permute.xlu0 %710
        %v713 = vsel %vm406, %v711, %v562
        %714 = vrot.lane.b32.xlu0 %v396, 48
        %v715 = vpop.permute.xlu0 %714
        %v717 = vmul.f32 %v391, %v715
        %v718 = vmul.f32 %v713, %v397
        %720 = vrot.lane.b32.xlu0 %v718, 48
        %v721 = vpop.permute.xlu0 %720
        %v723 = vadd.f32 %v717, %v721
        %v724 = vpack.c.bf16 %v709, %v709
        %v725 = vpack.c.bf16 %v723, %v723
        %727 = vrot.lane.b32.xlu0 %v724, 112
        %v728 = vpop.permute.xlu0 %727
        %730 = vrot.lane.b32.xlu0 %v725, 80
        %v731 = vpop.permute.xlu0 %730
        %v733 = vsel %vm435, %v728, 0
        %v736 = vsel %vm435, %v731, 0
        %738 = vmatprep.subr.bf16.mxu0 0
        %739 = vmatpush1.bf16.xpose.msra.mxu0 %v736
        %740 = vmatprep.subr.bf16.mxu0 0
        %741 = vmatpush1.bf16.xpose.msra.mxu0 0
        %742 = vmatprep.subr.bf16.mxu0 0
        %743 = vmatpush1.bf16.xpose.msra.mxu0 0
        %744 = vmatprep.subr.bf16.mxu0 0
        %745 = vmatpush1.bf16.xpose.msra.mxu0 0
        %746 = vmatprep.subr.bf16.mxu0 0
        %747 = vmatpush1.bf16.xpose.msra.mxu0 0
        %748 = vmatprep.subr.bf16.mxu0 0
        %749 = vmatpush1.bf16.xpose.msra.mxu0 0
        %750 = vmatprep.subr.bf16.mxu0 0
        %751 = vmatpush1.bf16.xpose.msra.mxu0 0
        %752 = vmatprep.subr.bf16.mxu0 0
        %753 = vmatpush1.bf16.xpose.msra.mxu0 0
        %754 = vmatprep.subr.bf16.mxu0 0
        %755 = vmatpush1.bf16.xpose.msra.mxu0 0
        %756 = vmatprep.subr.bf16.mxu0 0
        %757 = vmatpush1.bf16.xpose.msra.mxu0 0
        %758 = vmatprep.subr.bf16.mxu0 0
        %759 = vmatpush1.bf16.xpose.msra.mxu0 0
        %760 = vmatprep.subr.bf16.mxu0 0
        %761 = vmatpush1.bf16.xpose.msra.mxu0 0
        %762 = vmatprep.subr.bf16.mxu0 0
        %763 = vmatpush1.bf16.xpose.msra.mxu0 0
        %764 = vmatprep.subr.bf16.mxu0 0
        %765 = vmatpush1.bf16.xpose.msra.mxu0 0
        %766 = vmatprep.subr.bf16.mxu0 0
        %767 = vmatpush1.bf16.xpose.msra.mxu0 0
        %768 = vmatprep.subr.bf16.mxu0 0
        %769 = vmatpush1.bf16.xpose.msra.mxu0 0
        %770 = vmatprep.mubr.bf16.mxu0 0
        %771 = vmatmul.mubr.bf16.gmra.mrb[0].mxu0 %v733
        %v772 = vpop.f32.mrb[0].mxu0
        %v773 = vadd.f32 %v398, %v772
        %v774 = vpop.f32.mrb[0].mxu0
        %v775 = vpop.f32.mrb[0].mxu0
        %v776 = vpop.f32.mrb[0].mxu0
        %777 = vdwg.mxu0
        %v778 = vsel %vm435, %v773, -inf
        %779 = vmax.xlane.f32.xlu0 %v778
        %v780 = vpop.xlane.xlu0 %779
        %v781 = vsub.f32 %v773, %v780
        %v782 = vmul.f32 %v781, 1.442695
        %v783 = vpow.pop %v782
        %v784 = vsel %vm435, %v783, 0.0
        %785 = vadd.xlane.f32.xlu0 %v784
        %v786 = vpop.xlane.xlu0 %785
        %v787 = vpack.c.bf16 %v783, %v783
        %788 = vrot.lane.b32.xlu0 %v492, 48
        %v789 = vpop.permute.xlu0 %788
        %v791 = vsel %vm435, %v787, 0
        %v794 = vsel %vm499, %v789, 0
        %796 = vmatprep.subr.bf16.mxu0 0
        %797 = vmatpush1.bf16.msra.mxu0 %v794
        %798 = vmatprep.subr.bf16.mxu0 0
        %799 = vmatpush1.bf16.msra.mxu0 0
        %800 = vmatprep.subr.bf16.mxu0 0
        %801 = vmatpush1.bf16.msra.mxu0 0
        %802 = vmatprep.subr.bf16.mxu0 0
        %803 = vmatpush1.bf16.msra.mxu0 0
        %804 = vmatprep.subr.bf16.mxu0 0
        %805 = vmatpush1.bf16.msra.mxu0 0
        %806 = vmatprep.subr.bf16.mxu0 0
        %807 = vmatpush1.bf16.msra.mxu0 0
        %808 = vmatprep.subr.bf16.mxu0 0
        %809 = vmatpush1.bf16.msra.mxu0 0
        %810 = vmatprep.subr.bf16.mxu0 0
        %811 = vmatpush1.bf16.msra.mxu0 0
        %812 = vmatprep.subr.bf16.mxu0 0
        %813 = vmatpush1.bf16.msra.mxu0 0
        %814 = vmatprep.subr.bf16.mxu0 0
        %815 = vmatpush1.bf16.msra.mxu0 0
        %816 = vmatprep.subr.bf16.mxu0 0
        %817 = vmatpush1.bf16.msra.mxu0 0
        %818 = vmatprep.subr.bf16.mxu0 0
        %819 = vmatpush1.bf16.msra.mxu0 0
        %820 = vmatprep.subr.bf16.mxu0 0
        %821 = vmatpush1.bf16.msra.mxu0 0
        %822 = vmatprep.subr.bf16.mxu0 0
        %823 = vmatpush1.bf16.msra.mxu0 0
        %824 = vmatprep.subr.bf16.mxu0 0
        %825 = vmatpush1.bf16.msra.mxu0 0
        %826 = vmatprep.subr.bf16.mxu0 0
        %827 = vmatpush1.bf16.msra.mxu0 0
        %828 = vmatprep.mubr.bf16.mxu0 0
        %829 = vmatmul.mubr.bf16.gmra.mrb[0].mxu0 %v791
        %v830 = vpop.f32.mrb[0].mxu0
        %v831 = vadd.f32 0.0, %v830
        %v832 = vpop.f32.mrb[0].mxu0
        %v833 = vpop.f32.mrb[0].mxu0
        %v834 = vpop.f32.mrb[0].mxu0
        %835 = vdwg.mxu0
        %v836 = vrcp.pop %v786
        %v837 = vmul.f32 %v831, %v836
        %839 = vrot.lane.b32.xlu0 %v837, 16
        %v840 = vpop.permute.xlu0 %839
        %vm842 = vcmask 195712
        %843 = vst.msk [vmem:[#allocation2] sm:$0xff] %vm842, %v840
        %v844 = vsel %vm406, %v416, %v696
        %845 = vrot.lane.b32.xlu0 %v396, 24
        %v846 = vpop.permute.xlu0 %845
        %v848 = vmul.f32 %v391, %v846
        %v849 = vmul.f32 %v844, %v397
        %851 = vrot.lane.b32.xlu0 %v849, 24
        %v852 = vpop.permute.xlu0 %851
        %v854 = vadd.f32 %v848, %v852
        %v855 = vmul.f32 %v854, 0.35355338
        %856 = vrot.lane.b32.xlu0 %v391, 68
        %v857 = vpop.permute.xlu0 %856
        %v859 = vsel %vm406, %v857, %v711
        %860 = vrot.lane.b32.xlu0 %v396, 56
        %v861 = vpop.permute.xlu0 %860
        %v863 = vmul.f32 %v391, %v861
        %v864 = vmul.f32 %v859, %v397
        %866 = vrot.lane.b32.xlu0 %v864, 56
        %v867 = vpop.permute.xlu0 %866
        %v869 = vadd.f32 %v863, %v867
        %v870 = vpack.c.bf16 %v855, %v855
        %v871 = vpack.c.bf16 %v869, %v869
        %873 = vrot.lane.b32.xlu0 %v870, 104
        %v874 = vpop.permute.xlu0 %873
        %876 = vrot.lane.b32.xlu0 %v871, 72
        %v877 = vpop.permute.xlu0 %876
        %v879 = vsel %vm435, %v874, 0
        %v882 = vsel %vm435, %v877, 0
        %884 = vmatprep.subr.bf16.mxu0 0
        %885 = vmatpush1.bf16.xpose.msra.mxu0 %v882
        %886 = vmatprep.subr.bf16.mxu0 0
        %887 = vmatpush1.bf16.xpose.msra.mxu0 0
        %888 = vmatprep.subr.bf16.mxu0 0
        %889 = vmatpush1.bf16.xpose.msra.mxu0 0
        %890 = vmatprep.subr.bf16.mxu0 0
        %891 = vmatpush1.bf16.xpose.msra.mxu0 0
        %892 = vmatprep.subr.bf16.mxu0 0
        %893 = vmatpush1.bf16.xpose.msra.mxu0 0
        %894 = vmatprep.subr.bf16.mxu0 0
        %895 = vmatpush1.bf16.xpose.msra.mxu0 0
        %896 = vmatprep.subr.bf16.mxu0 0
        %897 = vmatpush1.bf16.xpose.msra.mxu0 0
        %898 = vmatprep.subr.bf16.mxu0 0
        %899 = vmatpush1.bf16.xpose.msra.mxu0 0
        %900 = vmatprep.subr.bf16.mxu0 0
        %901 = vmatpush1.bf16.xpose.msra.mxu0 0
        %902 = vmatprep.subr.bf16.mxu0 0
        %903 = vmatpush1.bf16.xpose.msra.mxu0 0
        %904 = vmatprep.subr.bf16.mxu0 0
        %905 = vmatpush1.bf16.xpose.msra.mxu0 0
        %906 = vmatprep.subr.bf16.mxu0 0
        %907 = vmatpush1.bf16.xpose.msra.mxu0 0
        %908 = vmatprep.subr.bf16.mxu0 0
        %909 = vmatpush1.bf16.xpose.msra.mxu0 0
        %910 = vmatprep.subr.bf16.mxu0 0
        %911 = vmatpush1.bf16.xpose.msra.mxu0 0
        %912 = vmatprep.subr.bf16.mxu0 0
        %913 = vmatpush1.bf16.xpose.msra.mxu0 0
        %914 = vmatprep.subr.bf16.mxu0 0
        %915 = vmatpush1.bf16.xpose.msra.mxu0 0
        %916 = vmatprep.mubr.bf16.mxu0 0
        %917 = vmatmul.mubr.bf16.gmra.mrb[0].mxu0 %v879
        %v918 = vpop.f32.mrb[0].mxu0
        %v919 = vadd.f32 %v398, %v918
        %v920 = vpop.f32.mrb[0].mxu0
        %v921 = vpop.f32.mrb[0].mxu0
        %v922 = vpop.f32.mrb[0].mxu0
        %923 = vdwg.mxu0
        %v924 = vsel %vm435, %v919, -inf
        %925 = vmax.xlane.f32.xlu0 %v924
        %v926 = vpop.xlane.xlu0 %925
        %v927 = vsub.f32 %v919, %v926
        %v928 = vmul.f32 %v927, 1.442695
        %v929 = vpow.pop %v928
        %v930 = vsel %vm435, %v929, 0.0
        %931 = vadd.xlane.f32.xlu0 %v930
        %v932 = vpop.xlane.xlu0 %931
        %v933 = vpack.c.bf16 %v929, %v929
        %934 = vrot.lane.b32.xlu0 %v492, 40
        %v935 = vpop.permute.xlu0 %934
        %v937 = vsel %vm435, %v933, 0
        %v940 = vsel %vm499, %v935, 0
        %942 = vmatprep.subr.bf16.mxu0 0
        %943 = vmatpush1.bf16.msra.mxu0 %v940
        %944 = vmatprep.subr.bf16.mxu0 0
        %945 = vmatpush1.bf16.msra.mxu0 0
        %946 = vmatprep.subr.bf16.mxu0 0
        %947 = vmatpush1.bf16.msra.mxu0 0
        %948 = vmatprep.subr.bf16.mxu0 0
        %949 = vmatpush1.bf16.msra.mxu0 0
        %950 = vmatprep.subr.bf16.mxu0 0
        %951 = vmatpush1.bf16.msra.mxu0 0
        %952 = vmatprep.subr.bf16.mxu0 0
        %953 = vmatpush1.bf16.msra.mxu0 0
        %954 = vmatprep.subr.bf16.mxu0 0
        %955 = vmatpush1.bf16.msra.mxu0 0
        %956 = vmatprep.subr.bf16.mxu0 0
        %957 = vmatpush1.bf16.msra.mxu0 0
        %958 = vmatprep.subr.bf16.mxu0 0
        %959 = vmatpush1.bf16.msra.mxu0 0
        %960 = vmatprep.subr.bf16.mxu0 0
        %961 = vmatpush1.bf16.msra.mxu0 0
        %962 = vmatprep.subr.bf16.mxu0 0
        %963 = vmatpush1.bf16.msra.mxu0 0
        %964 = vmatprep.subr.bf16.mxu0 0
        %965 = vmatpush1.bf16.msra.mxu0 0
        %966 = vmatprep.subr.bf16.mxu0 0
        %967 = vmatpush1.bf16.msra.mxu0 0
        %968 = vmatprep.subr.bf16.mxu0 0
        %969 = vmatpush1.bf16.msra.mxu0 0
        %970 = vmatprep.subr.bf16.mxu0 0
        %971 = vmatpush1.bf16.msra.mxu0 0
        %972 = vmatprep.subr.bf16.mxu0 0
        %973 = vmatpush1.bf16.msra.mxu0 0
        %974 = vmatprep.mubr.bf16.mxu0 0
        %975 = vmatmul.mubr.bf16.gmra.mrb[0].mxu0 %v937
        %v976 = vpop.f32.mrb[0].mxu0
        %v977 = vadd.f32 0.0, %v976
        %v978 = vpop.f32.mrb[0].mxu0
        %v979 = vpop.f32.mrb[0].mxu0
        %v980 = vpop.f32.mrb[0].mxu0
        %981 = vdwg.mxu0
        %v982 = vrcp.pop %v932
        %v983 = vmul.f32 %v977, %v982
        %985 = vrot.lane.b32.xlu0 %v983, 24
        %v986 = vpop.permute.xlu0 %985
        %vm988 = vcmask 261312
        %989 = vst.msk [vmem:[#allocation2] sm:$0xff] %vm988, %v986
        %v990 = vld [vmem:[#allocation2] sm:$0xff]
        %v991 = vpack.c.bf16 %v990, %v990
        %v992 = vld [vmem:[%s3] sm:$0xf]
        %v993 = vld [vmem:[%s3 + $0x4] sm:$0xf]
        %v994 = vld [vmem:[%s3 + $0x8] sm:$0xf]
        %v995 = vld [vmem:[%s3 + $0xc] sm:$0xf]
        %v996 = vld [vmem:[%s4] sm:$0x1]
        %v998 = vlaneseq
        %v999 = vshrl.u32 %v998, 7
        %v1000 = vsub.s32 0, %v999
        %v1001 = vrot.slane %v996, %v1000
        %v1007 = vunpack.c.l.b16 %v992
        %v1008 = vunpack.c.l.b16 %v993
        %v1009 = vunpack.c.l.b16 %v994
        %v1010 = vunpack.c.l.b16 %v995
        %v1011 = vpack.c.b16 %v1008, %v1007
        %v1012 = vpack.c.b16 %v1010, %v1009
        %v1016 = vsel %vm352, %v991, 0
        %1018 = vmatprep.subr.bf16.mxu0 0
        %1019 = vmatpush1.bf16.msra.mxu0 %v1011
        %1020 = vmatprep.subr.bf16.mxu0 0
        %1021 = vmatpush1.bf16.msra.mxu0 %v1012
        %1022 = vmatprep.subr.bf16.mxu0 0
        %1023 = vmatpush1.bf16.msra.mxu0 0
        %1024 = vmatprep.subr.bf16.mxu0 0
        %1025 = vmatpush1.bf16.msra.mxu0 0
        %1026 = vmatprep.subr.bf16.mxu0 0
        %1027 = vmatpush1.bf16.msra.mxu0 0
        %1028 = vmatprep.subr.bf16.mxu0 0
        %1029 = vmatpush1.bf16.msra.mxu0 0
        %1030 = vmatprep.subr.bf16.mxu0 0
        %1031 = vmatpush1.bf16.msra.mxu0 0
        %1032 = vmatprep.subr.bf16.mxu0 0
        %1033 = vmatpush1.bf16.msra.mxu0 0
        %1034 = vmatprep.subr.bf16.mxu0 0
        %1035 = vmatpush1.bf16.msra.mxu0 0
        %1036 = vmatprep.subr.bf16.mxu0 0
        %1037 = vmatpush1.bf16.msra.mxu0 0
        %1038 = vmatprep.subr.bf16.mxu0 0
        %1039 = vmatpush1.bf16.msra.mxu0 0
        %1040 = vmatprep.subr.bf16.mxu0 0
        %1041 = vmatpush1.bf16.msra.mxu0 0
        %1042 = vmatprep.subr.bf16.mxu0 0
        %1043 = vmatpush1.bf16.msra.mxu0 0
        %1044 = vmatprep.subr.bf16.mxu0 0
        %1045 = vmatpush1.bf16.msra.mxu0 0
        %1046 = vmatprep.subr.bf16.mxu0 0
        %1047 = vmatpush1.bf16.msra.mxu0 0
        %1048 = vmatprep.subr.bf16.mxu0 0
        %1049 = vmatpush1.bf16.msra.mxu0 0
        %1050 = vmatprep.mubr.bf16.mxu0 0
        %1051 = vmatmul.mubr.bf16.gmra.mrb[0].mxu0 %v1016
        %v1052 = vpop.f32.mrb[0].mxu0
        %v1053 = vadd.f32 %v1001, %v1052
        %v1054 = vpop.f32.mrb[0].mxu0
        %v1055 = vpop.f32.mrb[0].mxu0
        %v1056 = vpop.f32.mrb[0].mxu0
        %1057 = vdwg.mxu0
        %1058 = vst.msk [vmem:[%s322] sm:$0xff] %vm352, %v1053
        %s1059 = sand.u32 %s205, 1
        %s1060 = scalar_lea.sflag [#allocation5], %s1059
        %s1061 = sand.u32 %s205, 1
        %s1062 = smul.addr %s1061, 8
        %s1063 = scalar_lea.vmem [#allocation8], %s1062
        // Predicated region
        $region61: #{fwd.1} parent=51 // pred_check
          %p1064 = pneg %p215
        $region62: #{fwd.1} parent=51 // pred_check_branch
          %1066 = sbr.rel (%p1064) target = $region64
        $region63: #{fwd.1} parent=51 // pred_region
          %s1068 = ssub.s32 128, 128
          %1069 = vsyncadd %s1060, %s1068
          %s1070 = smul.addr %s24, 128
          %s1071 = scalar_lea.hbm %s8, %s1070
          %s1073 = sshll.u32 %s1063, 4
          %s1074 = int_to_ptr.vmem [resolvable:$true] %s1073
          %1076 = dma.vmem_to_hbm [thread:$0]  %s1074, 128, %s1071, %s1060
        $region64: #{fwd.1} parent=51 // pred_fallthru
          _
      $region52: #{fwd.1} parent=5 // pred_fallthru
        _
      %p1077 = scmp.le.s32.totalorder 2, %s19
      // Predicated region
      $region65: #{fwd.1} parent=5 // pred_check
        %p1078 = pneg %p1077
      $region66: #{fwd.1} parent=5 // pred_check_branch
        %1080 = sbr.rel (%p1078) target = $region68
      $region67: #{fwd.1} parent=5 // pred_region
        %s1081 = ssub.s32 %s19, 2
        // Predicated region
        $region69: #{fwd.1} parent=67 // pred_check
          %p1082 = pneg %p221
        $region70: #{fwd.1} parent=67 // pred_check_branch
          %1084 = sbr.rel (%p1082) target = $region72
        $region71: #{fwd.1} parent=67 // pred_region
          %s1085 = sand.u32 %s206, 1
          %s1086 = scalar_lea.sflag [#allocation5], %s1085
          %s1087 = sand.u32 %s206, 1
          %s1088 = smul.addr %s1087, 8
          %s1089 = scalar_lea.vmem [#allocation8], %s1088
          %1090 = dma.done %s1086, 128
        $region72: #{fwd.1} parent=67 // pred_fallthru
          _
      $region68: #{fwd.1} parent=5 // pred_fallthru
        _
    $region6: #{fwd.1} parent=1 // loop_footer
      %s23 = sadd.s32 1, %s19
    $region7: #{fwd.1} parent=1 // loop_footer_branch
      %18 = sbr.rel target = $region3
    $region8: #{fwd.1} parent=1 // loop_exit
      _
    %1091 = vsyncpa [#allocation4], 1
    %s1092 = scalar_lea.sflag [#allocation4], 1
    %1093 = vsyncpa %s1092, 1
    %1094 = vsyncpa [#allocation7], 1
    %1095 = vsyncpa [#allocation5], 1
    %s1096 = scalar_lea.sflag [#allocation5], 1
    %1097 = vsyncpa %s1096, 1

</llo_original>
